<compile_context>
chip_gen: v7x
topology: tpu7x:2x2x1
jax: 0.10.0
libtpu: 0.0.40
codegen_flags: <defaults>
</compile_context>

<pallas_src>
import functools

import jax
import jax.numpy as jnp
from jax.experimental import pallas as pl
from jax.experimental.pallas import tpu as pltpu


def _round_up(x, m):
    return ((x + m - 1) // m) * m


def _num_tensorcores():
    """Best-effort detection of TensorCores per device (megacore split)."""
    try:
        kind = jax.devices()[0].device_kind.lower()
    except Exception:
        return 1
    return 2 if any(t in kind for t in ("v7", "v4", "v5p")) else 1


def _pick_tile(n, c, itemsize):
    """Row-tile size: double-buffered (logits tile + label relayout) <= ~8 MiB."""
    lane_bytes = _round_up(max(c, 1), 128) * itemsize   # logits VMEM row footprint
    row_bytes = lane_bytes + 128 * 4                     # + (tm,1) int32 label relayout
    budget = 8 * 1024 * 1024
    tm = budget // (2 * row_bytes)
    tm = max(8, min(8192, (tm // 8) * 8))
    if n <= tm:
        tm = _round_up(max(n, 1), 8)
    return tm


def _ce_partial_kernel(labels_ref, logits_ref, out_ref):
    """Accumulate (sum of NLL, valid count) over one row tile.

    labels_ref: (TM, 1) int32  class index, <0 means ignore (ignore_index / pad)
    logits_ref: (TM, C)        logits in stored dtype (C = full class dim)
    out_ref:    (8, 128) f32   lane-dense accumulator block for this shard:
                               lane0 = sum of per-row NLL, lane1 = valid count
    """
    i = pl.program_id(1)

    @pl.when(i == 0)
    def _init():
        out_ref[...] = jnp.zeros_like(out_ref)

    logits = logits_ref[...].astype(jnp.float32)          # (TM, C)
    lbl = labels_ref[...]                                  # (TM, 1) int32

    valid = lbl >= 0
    cls = jnp.where(valid, lbl, 0)

    # Row-wise numerically-stable logsumexp along the (short, native-C) lane axis.
    row_max = jnp.max(logits, axis=-1, keepdims=True)                      # (TM,1)
    sumexp = jnp.sum(jnp.exp(logits - row_max), axis=-1, keepdims=True)    # (TM,1)
    lse = row_max + jnp.log(sumexp)                                        # (TM,1)

    # Gather logits[r, cls[r]] via a one-hot select (no dynamic gather on TPU).
    col = jax.lax.broadcasted_iota(jnp.int32, logits.shape, 1)
    picked = jnp.sum(jnp.where(col == cls, logits, 0.0),
                     axis=-1, keepdims=True)                               # (TM,1)

    w = valid.astype(jnp.float32)                                          # (TM,1)
    loss_row = (lse - picked) * w                                          # (TM,1)

    # Single reduction: lane0 <- loss, lane1 <- weight, reduce over rows once.
    lane = jax.lax.broadcasted_iota(jnp.int32, (loss_row.shape[0], 128), 1)
    contrib = jnp.where(lane == 0, loss_row, jnp.where(lane == 1, w, 0.0))
    out_ref[...] += jnp.sum(contrib, axis=0, keepdims=True)                # (1,128)


def _mean_cross_entropy(logits, labels):
    """Mean CE (PyTorch semantics, negative labels ignored) via one pallas_call."""
    c = logits.shape[-1]
    lg = logits.reshape(-1, c)                        # stored dtype, no HBM upcast
    lb = labels.reshape(-1).astype(jnp.int32)
    n = lg.shape[0]

    itemsize = jnp.dtype(lg.dtype).itemsize
    tm = _pick_tile(n, c, itemsize)
    shards = _num_tensorcores() if n >= 2 * tm else 1
    n_pad = _round_up(n, tm * shards)
    tiles_per_shard = n_pad // (tm * shards)

    if n_pad != n:
        lg = jnp.pad(lg, ((0, n_pad - n), (0, 0)))
        lb = jnp.pad(lb, (0, n_pad - n), constant_values=-1)
    lb = lb.reshape(-1, 1)

    acc = pl.pallas_call(
        _ce_partial_kernel,
        out_shape=jax.ShapeDtypeStruct((shards * 8, 128), jnp.float32),
        grid=(shards, tiles_per_shard),
        in_specs=[
            pl.BlockSpec((tm, 1), lambda p, i: (p * tiles_per_shard + i, 0)),
            pl.BlockSpec((tm, c), lambda p, i: (p * tiles_per_shard + i, 0)),
        ],
        out_specs=pl.BlockSpec((8, 128), lambda p, i: (p, 0)),
        compiler_params=pltpu.CompilerParams(
            dimension_semantics=("parallel", "arbitrary"),
            vmem_limit_bytes=32 * 1024 * 1024),
    )(lb, lg)

    # Combine per-shard partials (sublane 0 holds the values).
    partial = acc.reshape(shards, 8, 128)[:, 0, :].sum(axis=0)   # (128,)
    # Note: if every row is ignored this is 0/0 = NaN, matching PyTorch's
    # behavior for an all-ignored mean CE.
    return partial[0] / partial[1]


@functools.partial(jax.jit, static_argnames=("da_weight", "mc_weight"))
def custom_loss(mc_logits, da_logits, mc_labels, da_labels,
                da_weight=1.0, mc_weight=1.0):
    """JAX/Pallas equivalent of CustomLoss.forward."""
    mc_loss = _mean_cross_entropy(mc_logits, mc_labels)
    da_loss = _mean_cross_entropy(da_logits, da_labels)
    total_loss = mc_weight * mc_loss + da_weight * da_loss
    return total_loss, mc_loss, da_loss


def _ref_ce_mean(logits, labels):
    """Pure-JAX reference: mean CE with PyTorch-style ignore of negative labels."""
    c = logits.shape[-1]
    lg = logits.reshape(-1, c).astype(jnp.float32)
    lb = labels.reshape(-1)
    valid = lb >= 0
    lb_safe = jnp.where(valid, lb, 0)
    logp = jax.nn.log_softmax(lg, axis=-1)
    nll = -jnp.take_along_axis(logp, lb_safe[:, None], axis=-1)[:, 0]
    return jnp.sum(jnp.where(valid, nll, 0.0)) / jnp.sum(valid.astype(jnp.float32))


if __name__ == "__main__":
    key = jax.random.PRNGKey(0)
    k1, k2, k3, k4 = jax.random.split(key, 4)

    batch = 2
    num_choices = 4       # multiple-choice classes (mc head)
    seq = 8               # sequence positions for dialogue-act head
    num_da_classes = 10   # dialogue-act classes

    mc_logits = jax.random.normal(k1, (batch, num_choices), dtype=jnp.float32)
    da_logits = jax.random.normal(k2, (batch, seq, num_da_classes), dtype=jnp.float32)
    mc_labels = jax.random.randint(k3, (batch,), 0, num_choices, dtype=jnp.int32)
    da_labels = jax.random.randint(k4, (batch, seq), 0, num_da_classes, dtype=jnp.int32)

    # Run 1: all labels valid.
    total_loss, mc_loss, da_loss = custom_loss(
        mc_logits, da_logits, mc_labels, da_labels,
        da_weight=1.0, mc_weight=1.0)
    jax.block_until_ready((total_loss, mc_loss, da_loss))

    ref_mc = _ref_ce_mean(mc_logits, mc_labels)
    ref_da = _ref_ce_mean(da_logits, da_labels)
    assert jnp.allclose(mc_loss, ref_mc, atol=1e-5, rtol=1e-5)
    assert jnp.allclose(da_loss, ref_da, atol=1e-5, rtol=1e-5)
    assert jnp.allclose(total_loss, ref_mc + ref_da, atol=1e-5, rtol=1e-5)

    # Run 2: exercise the ignore_index (-100) path on the da head + weights.
    da_labels_ign = da_labels.at[0, :2].set(-100)
    total2, mc2_, da2_ = custom_loss(
        mc_logits, da_logits, mc_labels, da_labels_ign,
        da_weight=0.5, mc_weight=2.0)
    jax.block_until_ready((total2, mc2_, da2_))

    ref_da2 = _ref_ce_mean(da_logits, da_labels_ign)
    assert jnp.allclose(mc2_, ref_mc, atol=1e-5, rtol=1e-5)
    assert jnp.allclose(da2_, ref_da2, atol=1e-5, rtol=1e-5)
    assert jnp.allclose(total2, 2.0 * ref_mc + 0.5 * ref_da2, atol=1e-5, rtol=1e-5)

    print("KERNEL_OK")
</pallas_src>

<mosaic_0001>
module attributes {stable_mosaic.version = 11 : i64} {
  func.func @_ce_partial_kernel(%arg0: i32, %arg1: i32, %arg2: memref<8x1xi32, #tpu.memory_space<vmem>>, %arg3: memref<8x4xf32, #tpu.memory_space<vmem>>, %arg4: memref<8x128xf32, #tpu.memory_space<vmem>>) attributes {dimension_semantics = [#tpu.dimension_semantics<parallel>, #tpu.dimension_semantics<arbitrary>], iteration_bounds = array<i64: 1, 1>, scalar_prefetch = 0 : i64, scratch_operands = 0 : i64, tpu.core_type = #tpu.core_type<tc>, window_params = [{transform_indices = @transform_0, window_bounds = array<i64: 8, 1>}, {transform_indices = @transform_1, window_bounds = array<i64: 8, 4>}, {transform_indices = @transform_2, window_bounds = array<i64: 8, 128>}]} {
    %c0_i32 = arith.constant 0 : i32
    %0 = arith.cmpi eq, %arg1, %c0_i32 : i32
    %1 = arith.extui %0 : i1 to i32
    %c0_i32_0 = arith.constant 0 : i32
    %2 = arith.cmpi ne, %1, %c0_i32_0 : i32
    scf.if %2 {
      %cst_16 = arith.constant 0.000000e+00 : f32
      %47 = vector.broadcast %cst_16 : f32 to vector<8x128xf32>
      %c0_17 = arith.constant 0 : index
      %c0_18 = arith.constant 0 : index
      %48 = vector.load %arg4[%c0_17, %c0_18] : memref<8x128xf32, #tpu.memory_space<vmem>>, vector<8x128xf32>
      tpu.vector_store %arg4[%c0_17, %c0_18], %47 {strides = array<i32>} : memref<8x128xf32, #tpu.memory_space<vmem>>, vector<8x128xf32>,
    } else {
    }
    %c0 = arith.constant 0 : index
    %c0_1 = arith.constant 0 : index
    %3 = vector.load %arg3[%c0, %c0_1] : memref<8x4xf32, #tpu.memory_space<vmem>>, vector<8x4xf32>
    %c0_2 = arith.constant 0 : index
    %c0_3 = arith.constant 0 : index
    %4 = vector.load %arg2[%c0_2, %c0_3] : memref<8x1xi32, #tpu.memory_space<vmem>>, vector<8x1xi32>
    %c0_i32_4 = arith.constant 0 : i32
    %5 = vector.broadcast %c0_i32_4 : i32 to vector<8x1xi32>
    %6 = arith.cmpi sge, %4, %5 : vector<8x1xi32>
    %c0_i32_5 = arith.constant 0 : i32
    %7 = vector.broadcast %c0_i32_5 : i32 to vector<8x1xi32>
    %8 = arith.select %6, %4, %7 : vector<8x1xi1>, vector<8x1xi32>
    %cst = arith.constant dense<0xFF800000> : vector<8xf32>
    %9 = vector.multi_reduction <maximumf>, %3, %cst [1] : vector<8x4xf32> to vector<8xf32>
    %10 = vector.shape_cast %9 : vector<8xf32> to vector<8x1xf32>
    %11 = vector.broadcast %10 : vector<8x1xf32> to vector<8x4xf32>
    %12 = arith.subf %3, %11 : vector<8x4xf32>
    %13 = math.exp %12 : vector<8x4xf32>
    %cst_6 = arith.constant dense<0.000000e+00> : vector<8xf32>
    %14 = vector.multi_reduction <add>, %13, %cst_6 [1] : vector<8x4xf32> to vector<8xf32>
    %15 = vector.shape_cast %14 : vector<8xf32> to vector<8x1xf32>
    %16 = math.log %15 : vector<8x1xf32>
    %17 = arith.addf %10, %16 : vector<8x1xf32>
    %18 = tpu.iota {dimensions = array<i32: 1>} : vector<8x4xi32>
    %19 = vector.broadcast %8 : vector<8x1xi32> to vector<8x4xi32>
    %20 = arith.cmpi eq, %18, %19 : vector<8x4xi32>
    %cst_7 = arith.constant 0.000000e+00 : f32
    %21 = vector.broadcast %cst_7 : f32 to vector<8x4xf32>
    %22 = arith.select %20, %3, %21 : vector<8x4xi1>, vector<8x4xf32>
    %cst_8 = arith.constant dense<0.000000e+00> : vector<8xf32>
    %23 = vector.multi_reduction <add>, %22, %cst_8 [1] : vector<8x4xf32> to vector<8xf32>
    %24 = vector.shape_cast %23 : vector<8xf32> to vector<8x1xf32>
    %25 = arith.extui %6 : vector<8x1xi1> to vector<8x1xi32>
    %26 = arith.sitofp %25 : vector<8x1xi32> to vector<8x1xf32>
    %27 = arith.subf %17, %24 : vector<8x1xf32>
    %28 = arith.mulf %27, %26 : vector<8x1xf32>
    %29 = tpu.iota {dimensions = array<i32: 1>} : vector<8x128xi32>
    %c0_i32_9 = arith.constant 0 : i32
    %30 = vector.broadcast %c0_i32_9 : i32 to vector<8x128xi32>
    %31 = arith.cmpi eq, %29, %30 : vector<8x128xi32>
    %c1_i32 = arith.constant 1 : i32
    %32 = vector.broadcast %c1_i32 : i32 to vector<8x128xi32>
    %33 = arith.cmpi eq, %29, %32 : vector<8x128xi32>
    %cst_10 = arith.constant 0.000000e+00 : f32
    %34 = vector.shape_cast %26 : vector<8x1xf32> to vector<8x1xf32>
    %35 = vector.broadcast %34 : vector<8x1xf32> to vector<8x128xf32>
    %36 = vector.broadcast %cst_10 : f32 to vector<8x128xf32>
    %37 = arith.select %33, %35, %36 : vector<8x128xi1>, vector<8x128xf32>
    %38 = vector.shape_cast %28 : vector<8x1xf32> to vector<8x1xf32>
    %39 = vector.broadcast %38 : vector<8x1xf32> to vector<8x128xf32>
    %40 = arith.select %31, %39, %37 : vector<8x128xi1>, vector<8x128xf32>
    %c0_11 = arith.constant 0 : index
    %c0_12 = arith.constant 0 : index
    %41 = vector.load %arg4[%c0_11, %c0_12] : memref<8x128xf32, #tpu.memory_space<vmem>>, vector<8x128xf32>
    %cst_13 = arith.constant dense<0.000000e+00> : vector<128xf32>
    %42 = vector.multi_reduction <add>, %40, %cst_13 [0] : vector<8x128xf32> to vector<128xf32>
    %43 = vector.shape_cast %42 : vector<128xf32> to vector<1x128xf32>
    %44 = vector.broadcast %43 : vector<1x128xf32> to vector<8x128xf32>
    %45 = arith.addf %41, %44 : vector<8x128xf32>
    %c0_14 = arith.constant 0 : index
    %c0_15 = arith.constant 0 : index
    %46 = vector.load %arg4[%c0_14, %c0_15] : memref<8x128xf32, #tpu.memory_space<vmem>>, vector<8x128xf32>
    tpu.vector_store %arg4[%c0_14, %c0_15], %45 {strides = array<i32>} : memref<8x128xf32, #tpu.memory_space<vmem>>, vector<8x128xf32>,
    return
  }
  func.func @transform_0(%arg0: i32, %arg1: i32) -> (i32, i32) {
    %c1_i32 = arith.constant 1 : i32
    %0 = arith.muli %arg0, %c1_i32 : i32
    %1 = arith.addi %0, %arg1 : i32
    %c0_i32 = arith.constant 0 : i32
    %c0_i32_0 = arith.constant 0 : i32
    return %1, %c0_i32 : i32, i32
  }
  func.func @transform_1(%arg0: i32, %arg1: i32) -> (i32, i32) {
    %c1_i32 = arith.constant 1 : i32
    %0 = arith.muli %arg0, %c1_i32 : i32
    %1 = arith.addi %0, %arg1 : i32
    %c0_i32 = arith.constant 0 : i32
    %c0_i32_0 = arith.constant 0 : i32
    return %1, %c0_i32 : i32, i32
  }
  func.func @transform_2(%arg0: i32, %arg1: i32) -> (i32, i32) {
    %c0_i32 = arith.constant 0 : i32
    %c0_i32_0 = arith.constant 0 : i32
    return %arg0, %c0_i32 : i32, i32
  }
}

module attributes {stable_mosaic.version = 11 : i64} {
  func.func @_ce_partial_kernel(%arg0: i32, %arg1: i32, %arg2: memref<16x1xi32, #tpu.memory_space<vmem>>, %arg3: memref<16x10xf32, #tpu.memory_space<vmem>>, %arg4: memref<8x128xf32, #tpu.memory_space<vmem>>) attributes {dimension_semantics = [#tpu.dimension_semantics<parallel>, #tpu.dimension_semantics<arbitrary>], iteration_bounds = array<i64: 1, 1>, scalar_prefetch = 0 : i64, scratch_operands = 0 : i64, tpu.core_type = #tpu.core_type<tc>, window_params = [{transform_indices = @transform_0, window_bounds = array<i64: 16, 1>}, {transform_indices = @transform_1, window_bounds = array<i64: 16, 10>}, {transform_indices = @transform_2, window_bounds = array<i64: 8, 128>}]} {
    %c0_i32 = arith.constant 0 : i32
    %0 = arith.cmpi eq, %arg1, %c0_i32 : i32
    %1 = arith.extui %0 : i1 to i32
    %c0_i32_0 = arith.constant 0 : i32
    %2 = arith.cmpi ne, %1, %c0_i32_0 : i32
    scf.if %2 {
      %cst_16 = arith.constant 0.000000e+00 : f32
      %47 = vector.broadcast %cst_16 : f32 to vector<8x128xf32>
      %c0_17 = arith.constant 0 : index
      %c0_18 = arith.constant 0 : index
      %48 = vector.load %arg4[%c0_17, %c0_18] : memref<8x128xf32, #tpu.memory_space<vmem>>, vector<8x128xf32>
      tpu.vector_store %arg4[%c0_17, %c0_18], %47 {strides = array<i32>} : memref<8x128xf32, #tpu.memory_space<vmem>>, vector<8x128xf32>,
    } else {
    }
    %c0 = arith.constant 0 : index
    %c0_1 = arith.constant 0 : index
    %3 = vector.load %arg3[%c0, %c0_1] : memref<16x10xf32, #tpu.memory_space<vmem>>, vector<16x10xf32>
    %c0_2 = arith.constant 0 : index
    %c0_3 = arith.constant 0 : index
    %4 = vector.load %arg2[%c0_2, %c0_3] : memref<16x1xi32, #tpu.memory_space<vmem>>, vector<16x1xi32>
    %c0_i32_4 = arith.constant 0 : i32
    %5 = vector.broadcast %c0_i32_4 : i32 to vector<16x1xi32>
    %6 = arith.cmpi sge, %4, %5 : vector<16x1xi32>
    %c0_i32_5 = arith.constant 0 : i32
    %7 = vector.broadcast %c0_i32_5 : i32 to vector<16x1xi32>
    %8 = arith.select %6, %4, %7 : vector<16x1xi1>, vector<16x1xi32>
    %cst = arith.constant dense<0xFF800000> : vector<16xf32>
    %9 = vector.multi_reduction <maximumf>, %3, %cst [1] : vector<16x10xf32> to vector<16xf32>
    %10 = vector.shape_cast %9 : vector<16xf32> to vector<16x1xf32>
    %11 = vector.broadcast %10 : vector<16x1xf32> to vector<16x10xf32>
    %12 = arith.subf %3, %11 : vector<16x10xf32>
    %13 = math.exp %12 : vector<16x10xf32>
    %cst_6 = arith.constant dense<0.000000e+00> : vector<16xf32>
    %14 = vector.multi_reduction <add>, %13, %cst_6 [1] : vector<16x10xf32> to vector<16xf32>
    %15 = vector.shape_cast %14 : vector<16xf32> to vector<16x1xf32>
    %16 = math.log %15 : vector<16x1xf32>
    %17 = arith.addf %10, %16 : vector<16x1xf32>
    %18 = tpu.iota {dimensions = array<i32: 1>} : vector<16x10xi32>
    %19 = vector.broadcast %8 : vector<16x1xi32> to vector<16x10xi32>
    %20 = arith.cmpi eq, %18, %19 : vector<16x10xi32>
    %cst_7 = arith.constant 0.000000e+00 : f32
    %21 = vector.broadcast %cst_7 : f32 to vector<16x10xf32>
    %22 = arith.select %20, %3, %21 : vector<16x10xi1>, vector<16x10xf32>
    %cst_8 = arith.constant dense<0.000000e+00> : vector<16xf32>
    %23 = vector.multi_reduction <add>, %22, %cst_8 [1] : vector<16x10xf32> to vector<16xf32>
    %24 = vector.shape_cast %23 : vector<16xf32> to vector<16x1xf32>
    %25 = arith.extui %6 : vector<16x1xi1> to vector<16x1xi32>
    %26 = arith.sitofp %25 : vector<16x1xi32> to vector<16x1xf32>
    %27 = arith.subf %17, %24 : vector<16x1xf32>
    %28 = arith.mulf %27, %26 : vector<16x1xf32>
    %29 = tpu.iota {dimensions = array<i32: 1>} : vector<16x128xi32>
    %c0_i32_9 = arith.constant 0 : i32
    %30 = vector.broadcast %c0_i32_9 : i32 to vector<16x128xi32>
    %31 = arith.cmpi eq, %29, %30 : vector<16x128xi32>
    %c1_i32 = arith.constant 1 : i32
    %32 = vector.broadcast %c1_i32 : i32 to vector<16x128xi32>
    %33 = arith.cmpi eq, %29, %32 : vector<16x128xi32>
    %cst_10 = arith.constant 0.000000e+00 : f32
    %34 = vector.shape_cast %26 : vector<16x1xf32> to vector<16x1xf32>
    %35 = vector.broadcast %34 : vector<16x1xf32> to vector<16x128xf32>
    %36 = vector.broadcast %cst_10 : f32 to vector<16x128xf32>
    %37 = arith.select %33, %35, %36 : vector<16x128xi1>, vector<16x128xf32>
    %38 = vector.shape_cast %28 : vector<16x1xf32> to vector<16x1xf32>
    %39 = vector.broadcast %38 : vector<16x1xf32> to vector<16x128xf32>
    %40 = arith.select %31, %39, %37 : vector<16x128xi1>, vector<16x128xf32>
    %c0_11 = arith.constant 0 : index
    %c0_12 = arith.constant 0 : index
    %41 = vector.load %arg4[%c0_11, %c0_12] : memref<8x128xf32, #tpu.memory_space<vmem>>, vector<8x128xf32>
    %cst_13 = arith.constant dense<0.000000e+00> : vector<128xf32>
    %42 = vector.multi_reduction <add>, %40, %cst_13 [0] : vector<16x128xf32> to vector<128xf32>
    %43 = vector.shape_cast %42 : vector<128xf32> to vector<1x128xf32>
    %44 = vector.broadcast %43 : vector<1x128xf32> to vector<8x128xf32>
    %45 = arith.addf %41, %44 : vector<8x128xf32>
    %c0_14 = arith.constant 0 : index
    %c0_15 = arith.constant 0 : index
    %46 = vector.load %arg4[%c0_14, %c0_15] : memref<8x128xf32, #tpu.memory_space<vmem>>, vector<8x128xf32>
    tpu.vector_store %arg4[%c0_14, %c0_15], %45 {strides = array<i32>} : memref<8x128xf32, #tpu.memory_space<vmem>>, vector<8x128xf32>,
    return
  }
  func.func @transform_0(%arg0: i32, %arg1: i32) -> (i32, i32) {
    %c1_i32 = arith.constant 1 : i32
    %0 = arith.muli %arg0, %c1_i32 : i32
    %1 = arith.addi %0, %arg1 : i32
    %c0_i32 = arith.constant 0 : i32
    %c0_i32_0 = arith.constant 0 : i32
    return %1, %c0_i32 : i32, i32
  }
  func.func @transform_1(%arg0: i32, %arg1: i32) -> (i32, i32) {
    %c1_i32 = arith.constant 1 : i32
    %0 = arith.muli %arg0, %c1_i32 : i32
    %1 = arith.addi %0, %arg1 : i32
    %c0_i32 = arith.constant 0 : i32
    %c0_i32_0 = arith.constant 0 : i32
    return %1, %c0_i32 : i32, i32
  }
  func.func @transform_2(%arg0: i32, %arg1: i32) -> (i32, i32) {
    %c0_i32 = arith.constant 0 : i32
    %c0_i32_0 = arith.constant 0 : i32
    return %arg0, %c0_i32 : i32, i32
  }
}

</mosaic_0001>

<llo_original>
// kernel: custom_loss.2
$region0: #{custom_loss.2}
  #allocation0 [shape = 'u32[]', space=smem, size = 0x4, offset = 0x4, fixed_abs, tag = 'smem constant byte address 0x4 - core index']
  #allocation1 [shape = 'u32[144,128]{1,0:T(1,128)}', space=vmem, size = 0x12000, scoped, tag = 'internal scratch']
  %s0 = inlined_call_operand.vmem [shape: s32[8,1], index: 0, kind: input, shape index: {}]
  %s1 = inlined_call_operand.vmem [shape: f32[8,4], index: 1, kind: input, shape index: {}]
  %s2 = inlined_call_operand.vmem [shape: f32[8,128], index: 2, kind: output, shape index: {}]
  %s3 = sld [smem:[#allocation0]]
  $region22: #{custom_loss.2} parent=0
    _
  %s5 = ssub.s32 1, %s3
  %s6 = scalar_select 0, %s5, %s3
  // Predicated region
  $region2: #{custom_loss.2} parent=0 // pred_check
    _
  $region3: #{custom_loss.2} parent=0 // pred_check_branch
    %8 = sbr.rel (0) target = $region5
  $region4: #{custom_loss.2} parent=0 // pred_region
    %s9 = sadd.s32 0, 0
    %p10 = scmp.lt.s32.totalorder %s9, 0
    %s11 = scalar_select %p10, %s9, 0
    %s12 = smul.addr %s11, 8
    %s13 = scalar_lea.vmem %s0, %s12
    %s14 = sadd.s32 0, 0
  $region5: #{custom_loss.2} parent=0 // pred_fallthru
    _
  // Predicated region
  $region6: #{custom_loss.2} parent=0 // pred_check
    _
  $region7: #{custom_loss.2} parent=0 // pred_check_branch
    %16 = sbr.rel (0) target = $region9
  $region8: #{custom_loss.2} parent=0 // pred_region
    %s17 = sadd.s32 0, 0
    %p18 = scmp.lt.s32.totalorder %s17, 0
    %s19 = scalar_select %p18, %s17, 0
    %s20 = smul.addr %s19, 8
    %s21 = scalar_lea.vmem %s1, %s20
    %s22 = sadd.s32 0, 0
  $region9: #{custom_loss.2} parent=0 // pred_fallthru
    _
  %s23 = sadd.s32 0, 0
  %p24 = scmp.lt.s32.totalorder %s23, 0
  %s25 = scalar_select %p24, %s23, 0
  %s26 = smul.addr %s25, 8
  %s27 = scalar_lea.vmem %s0, %s26
  %s28 = sadd.s32 0, 0
  %p29 = scmp.lt.s32.totalorder %s28, 0
  %s30 = scalar_select %p29, %s28, 0
  %s31 = smul.addr %s30, 8
  %s32 = scalar_lea.vmem %s1, %s31
  %s33 = sadd.s32 0, 0
  %p34 = scmp.lt.s32.totalorder %s33, 0
  %s35 = scalar_select %p34, %s33, 0
  %s36 = smul.addr %s35, 8
  %s37 = scalar_lea.vmem %s0, %s36
  %s38 = sadd.s32 0, 0
  %s39 = sadd.s32 0, 0
  %p40 = scmp.lt.s32.totalorder %s39, 0
  %s41 = scalar_select %p40, %s39, 0
  %s42 = smul.addr %s41, 8
  %s43 = scalar_lea.vmem %s1, %s42
  %s44 = sadd.s32 0, 0
  %p45 = scmp.eq.s32.totalorder 0, 0
  // Predicated region
  $region10: #{custom_loss.2} parent=0 // pred_check
    %p46 = pneg %p45
  $region11: #{custom_loss.2} parent=0 // pred_check_branch
    %48 = sbr.rel (%p46) target = $region13
  $region12: #{custom_loss.2} parent=0 // pred_region
    %49 = vst [vmem:[%s2] sm:$0xff] 0.0
  $region13: #{custom_loss.2} parent=0 // pred_fallthru
    _
  %v50 = vld [vmem:[%s43] sm:$0xff]
  %v51 = vld [vmem:[%s37] sm:$0xff]
  %vm52 = vcmp.ge.s32.totalorder %v51, 0
  %v53 = vsel %vm52, %v51, 0
  %vm54 = vcmask 31744
  %v55 = vsel %vm54, %v50, -inf
  %56 = vmax.xlane.f32.xlu0 %v55
  %v57 = vpop.xlane.xlu0 %56
  %v58 = vsub.f32 %v50, %v57
  %v59 = vmul.f32 %v58, 1.442695
  %v60 = vpow.pop %v59
  %v61 = vsel %vm54, %v60, 0.0
  %62 = vadd.xlane.f32.xlu0 %v61
  %v63 = vpop.xlane.xlu0 %62
  %v64 = vlog2.pop %v63
  %v65 = vmul.f32 %v64, 0.6931472
  %v66 = vadd.f32 %v57, %v65
  %v67 = vlaneseq
  %v68 = vand.u32 %v67, 127
  %69 = vset.pattern.permute.xlu0 0
  %70 = vperm.xlu0 %69, %v53
  %v71 = vpop.permute.xlu0 %70
  %vm72 = vcmp.eq.s32.totalorder %v68, %v71
  %v73 = vsel %vm72, %v50, 0.0
  %v74 = vsel %vm54, %v73, 0.0
  %75 = vadd.xlane.f32.xlu0 %v74
  %v76 = vpop.xlane.xlu0 %75
  %v77 = vsel %vm52, 1, 0
  %v78 = vcvt.s32.f32 %v77
  %v79 = vsub.f32 %v66, %v76
  %v80 = vmul.f32 %v79, %v78
  %vm81 = vcmp.eq.s32.totalorder %v68, 0
  %vm82 = vcmp.eq.s32.totalorder %v68, 1
  %84 = vset.pattern.permute.xlu0 0
  %85 = vperm.xlu0 %84, %v78
  %v86 = vpop.permute.xlu0 %85
  %v88 = vsel %vm82, %v86, 0.0
  %90 = vset.pattern.permute.xlu0 0
  %91 = vperm.xlu0 %90, %v80
  %v92 = vpop.permute.xlu0 %91
  %v94 = vsel %vm81, %v92, %v88
  %v95 = vld [vmem:[%s2] sm:$0xff]
  %v96 = vrot.slane %v94, 4
  %v97 = vadd.f32 %v94, %v96
  %v98 = vrot.slane %v97, 2
  %v99 = vadd.f32 %v97, %v98
  %v100 = vrot.slane %v99, 1
  %v101 = vadd.f32 %v99, %v100
  %v102 = vadd.f32 %v95, %v101
  %103 = vst [vmem:[%s2] sm:$0xff] %v102
  // Predicated region
  $region14: #{custom_loss.2} parent=0 // pred_check
    _
  $region15: #{custom_loss.2} parent=0 // pred_check_branch
    %105 = sbr.rel (0) target = $region17
  $region16: #{custom_loss.2} parent=0 // pred_region
    _
  $region17: #{custom_loss.2} parent=0 // pred_fallthru
    _
  // Predicated region
  $region18: #{custom_loss.2} parent=0 // pred_check
    _
  $region19: #{custom_loss.2} parent=0 // pred_check_branch
    %107 = sbr.rel (0) target = $region21
  $region20: #{custom_loss.2} parent=0 // pred_region
    _
  $region21: #{custom_loss.2} parent=0 // pred_fallthru
    _

// kernel: custom_loss.3
$region0: #{custom_loss.3}
  #allocation0 [shape = 'u32[]', space=smem, size = 0x4, offset = 0x4, fixed_abs, tag = 'smem constant byte address 0x4 - core index']
  #allocation1 [shape = 'u32[144,128]{1,0:T(1,128)}', space=vmem, size = 0x12000, scoped, tag = 'internal scratch']
  %s0 = inlined_call_operand.vmem [shape: s32[16,1], index: 0, kind: input, shape index: {}]
  %s1 = inlined_call_operand.vmem [shape: f32[16,10], index: 1, kind: input, shape index: {}]
  %s2 = inlined_call_operand.vmem [shape: f32[8,128], index: 2, kind: output, shape index: {}]
  %s3 = sld [smem:[#allocation0]]
  $region22: #{custom_loss.3} parent=0
    _
  %s5 = ssub.s32 1, %s3
  %s6 = scalar_select 0, %s5, %s3
  // Predicated region
  $region2: #{custom_loss.3} parent=0 // pred_check
    _
  $region3: #{custom_loss.3} parent=0 // pred_check_branch
    %8 = sbr.rel (0) target = $region5
  $region4: #{custom_loss.3} parent=0 // pred_region
    %s9 = sadd.s32 0, 0
    %s10 = smul.u32 2, %s9
    %p11 = scmp.lt.s32.totalorder %s10, 1
    %s12 = scalar_select %p11, %s10, 1
    %s13 = smul.addr %s12, 8
    %s14 = scalar_lea.vmem %s0, %s13
    %s15 = sadd.s32 0, 0
    %s16 = smul.u32 2, %s15
  $region5: #{custom_loss.3} parent=0 // pred_fallthru
    _
  // Predicated region
  $region6: #{custom_loss.3} parent=0 // pred_check
    _
  $region7: #{custom_loss.3} parent=0 // pred_check_branch
    %18 = sbr.rel (0) target = $region9
  $region8: #{custom_loss.3} parent=0 // pred_region
    %s19 = sadd.s32 0, 0
    %s20 = smul.u32 2, %s19
    %p21 = scmp.lt.s32.totalorder %s20, 1
    %s22 = scalar_select %p21, %s20, 1
    %s23 = smul.addr %s22, 8
    %s24 = scalar_lea.vmem %s1, %s23
    %s25 = sadd.s32 0, 0
    %s26 = smul.u32 2, %s25
  $region9: #{custom_loss.3} parent=0 // pred_fallthru
    _
  %s27 = sadd.s32 0, 0
  %s28 = smul.u32 2, %s27
  %p29 = scmp.lt.s32.totalorder %s28, 1
  %s30 = scalar_select %p29, %s28, 1
  %s31 = smul.addr %s30, 8
  %s32 = scalar_lea.vmem %s0, %s31
  %s33 = sadd.s32 0, 0
  %s34 = smul.u32 2, %s33
  %p35 = scmp.lt.s32.totalorder %s34, 1
  %s36 = scalar_select %p35, %s34, 1
  %s37 = smul.addr %s36, 8
  %s38 = scalar_lea.vmem %s1, %s37
  %s39 = sadd.s32 0, 0
  %s40 = smul.u32 2, %s39
  %p41 = scmp.lt.s32.totalorder %s40, 1
  %s42 = scalar_select %p41, %s40, 1
  %s43 = smul.addr %s42, 8
  %s44 = scalar_lea.vmem %s0, %s43
  %s45 = sadd.s32 0, 0
  %s46 = smul.u32 2, %s45
  %s47 = sadd.s32 0, 0
  %s48 = smul.u32 2, %s47
  %p49 = scmp.lt.s32.totalorder %s48, 1
  %s50 = scalar_select %p49, %s48, 1
  %s51 = smul.addr %s50, 8
  %s52 = scalar_lea.vmem %s1, %s51
  %s53 = sadd.s32 0, 0
  %s54 = smul.u32 2, %s53
  %p55 = scmp.eq.s32.totalorder 0, 0
  // Predicated region
  $region10: #{custom_loss.3} parent=0 // pred_check
    %p56 = pneg %p55
  $region11: #{custom_loss.3} parent=0 // pred_check_branch
    %58 = sbr.rel (%p56) target = $region13
  $region12: #{custom_loss.3} parent=0 // pred_region
    %59 = vst [vmem:[%s2] sm:$0xff] 0.0
  $region13: #{custom_loss.3} parent=0 // pred_fallthru
    _
  %v60 = vld [vmem:[%s52] sm:$0xff]
  %v61 = vld [vmem:[%s52 + $0x8] sm:$0xff]
  %v62 = vld [vmem:[%s44] sm:$0xff]
  %v63 = vld [vmem:[%s44 + $0x8] sm:$0xff]
  %vm64 = vcmp.ge.s32.totalorder %v62, 0
  %vm65 = vcmp.ge.s32.totalorder %v63, 0
  %v66 = vsel %vm64, %v62, 0
  %v67 = vsel %vm65, %v63, 0
  %vm68 = vcmask 80896
  %v69 = vsel %vm68, %v60, -inf
  %70 = vmax.xlane.f32.xlu0 %v69
  %v71 = vpop.xlane.xlu0 %70
  %v72 = vsel %vm68, %v61, -inf
  %73 = vmax.xlane.f32.xlu0 %v72
  %v74 = vpop.xlane.xlu0 %73
  %v75 = vsub.f32 %v60, %v71
  %v76 = vsub.f32 %v61, %v74
  %v77 = vmul.f32 %v75, 1.442695
  %v78 = vpow.pop %v77
  %v79 = vmul.f32 %v76, 1.442695
  %v80 = vpow.pop %v79
  %v81 = vsel %vm68, %v78, 0.0
  %82 = vadd.xlane.f32.xlu0 %v81
  %v83 = vpop.xlane.xlu0 %82
  %v84 = vsel %vm68, %v80, 0.0
  %85 = vadd.xlane.f32.xlu0 %v84
  %v86 = vpop.xlane.xlu0 %85
  %v87 = vlog2.pop %v83
  %v88 = vmul.f32 %v87, 0.6931472
  %v89 = vlog2.pop %v86
  %v90 = vmul.f32 %v89, 0.6931472
  %v91 = vadd.f32 %v71, %v88
  %v92 = vadd.f32 %v74, %v90
  %v93 = vlaneseq
  %v94 = vand.u32 %v93, 127
  %95 = vset.pattern.permute.xlu0 0
  %96 = vperm.xlu0 %95, %v66
  %v97 = vpop.permute.xlu0 %96
  %98 = vset.pattern.permute.xlu0 0
  %99 = vperm.xlu0 %98, %v67
  %v100 = vpop.permute.xlu0 %99
  %vm101 = vcmp.eq.s32.totalorder %v94, %v97
  %vm102 = vcmp.eq.s32.totalorder %v94, %v100
  %v103 = vsel %vm101, %v60, 0.0
  %v104 = vsel %vm102, %v61, 0.0
  %v105 = vsel %vm68, %v103, 0.0
  %106 = vadd.xlane.f32.xlu0 %v105
  %v107 = vpop.xlane.xlu0 %106
  %v108 = vsel %vm68, %v104, 0.0
  %109 = vadd.xlane.f32.xlu0 %v108
  %v110 = vpop.xlane.xlu0 %109
  %v111 = vsel %vm64, 1, 0
  %v112 = vsel %vm65, 1, 0
  %v113 = vcvt.s32.f32 %v111
  %v114 = vcvt.s32.f32 %v112
  %v115 = vsub.f32 %v91, %v107
  %v116 = vsub.f32 %v92, %v110
  %v117 = vmul.f32 %v115, %v113
  %v118 = vmul.f32 %v116, %v114
  %vm119 = vcmp.eq.s32.totalorder %v94, 0
  %vm120 = vcmp.eq.s32.totalorder %v94, 1
  %122 = vset.pattern.permute.xlu0 0
  %123 = vperm.xlu0 %122, %v113
  %v124 = vpop.permute.xlu0 %123
  %127 = vset.pattern.permute.xlu0 0
  %128 = vperm.xlu0 %127, %v114
  %v129 = vpop.permute.xlu0 %128
  %v131 = vsel %vm120, %v124, 0.0
  %v132 = vsel %vm120, %v129, 0.0
  %134 = vset.pattern.permute.xlu0 0
  %135 = vperm.xlu0 %134, %v117
  %v136 = vpop.permute.xlu0 %135
  %139 = vset.pattern.permute.xlu0 0
  %140 = vperm.xlu0 %139, %v118
  %v141 = vpop.permute.xlu0 %140
  %v143 = vsel %vm119, %v136, %v131
  %v144 = vsel %vm119, %v141, %v132
  %v145 = vld [vmem:[%s2] sm:$0xff]
  %v146 = vadd.f32 %v143, %v144
  %v147 = vrot.slane %v146, 4
  %v148 = vadd.f32 %v146, %v147
  %v149 = vrot.slane %v148, 2
  %v150 = vadd.f32 %v148, %v149
  %v151 = vrot.slane %v150, 1
  %v152 = vadd.f32 %v150, %v151
  %v153 = vadd.f32 %v145, %v152
  %154 = vst [vmem:[%s2] sm:$0xff] %v153
  // Predicated region
  $region14: #{custom_loss.3} parent=0 // pred_check
    _
  $region15: #{custom_loss.3} parent=0 // pred_check_branch
    %156 = sbr.rel (0) target = $region17
  $region16: #{custom_loss.3} parent=0 // pred_region
    _
  $region17: #{custom_loss.3} parent=0 // pred_fallthru
    _
  // Predicated region
  $region18: #{custom_loss.3} parent=0 // pred_check
    _
  $region19: #{custom_loss.3} parent=0 // pred_check_branch
    %158 = sbr.rel (0) target = $region21
  $region20: #{custom_loss.3} parent=0 // pred_region
    _
  $region21: #{custom_loss.3} parent=0 // pred_fallthru
    _

</llo_original>
